<compile_context>
chip_gen: v7x
topology: tpu7x:2x2x1
jax: 0.10.0
libtpu: 0.0.40
codegen_flags: <defaults>
</compile_context>

<pallas_src>
import jax
import jax.numpy as jnp
from jax import lax
from jax.experimental import pallas as pl
from jax.experimental.pallas import tpu as pltpu

_LANE = 128  # TPU vreg lane width


def _make_kernel(hw, thw, n_hw, unroll):
    """Builds the kernel body for a fixed (H*W, tile, n_steps) configuration."""
    n_chunks = thw // _LANE          # 128-lane chunks per full spatial tile
    inv_hw = 1.0 / float(hw)
    last = n_hw - 1
    rem = hw - last * thw            # valid elements in the last spatial tile
    n_full = rem // _LANE            # fully-valid chunks in the last tile
    rem_tail = rem % _LANE           # valid lanes in the straddling chunk
    ragged = (n_hw * thw) != hw      # last tile reads past H*W (undefined)

    def kernel(x_ref, w1t_ref, w2t_ref, o_ref, max_acc, sum_acc):
        # x_ref   : (1, C, thw)  current spatial tile of one batch element
        # w1t_ref : (C, Cr)      Conv2d(C, Cr, 1).weight, pre-transposed
        # w2t_ref : (Cr, C)      Conv2d(Cr, C, 1).weight, pre-transposed
        # o_ref   : (1, 1, C)    sigmoid(se(max) + se(avg)) for this batch elem
        # max_acc / sum_acc : (1, C, 128) f32 lane-wise running accumulators
        k = pl.program_id(1)

        @pl.when(k == 0)
        def _init():
            max_acc[...] = jnp.full_like(max_acc, -jnp.inf)
            sum_acc[...] = jnp.zeros_like(sum_acc)

        def load_chunk(ci):
            if isinstance(ci, int):
                start = ci * _LANE
            else:
                start = pl.multiple_of(ci * _LANE, _LANE)
            return x_ref[:, :, pl.ds(start, _LANE)].astype(jnp.float32)

        def fold_unmasked(n):
            # Pure element-wise (max, add) streaming fold over chunks [0, n).
            # NOTE: for bf16 inputs on v6e/v7x the max path could stay bf16;
            # kept f32 here (demo inputs are f32, and the sum must be f32).
            if n <= 0:
                return
            m0, s0 = max_acc[...], sum_acc[...]
            if n <= 8:
                m, s = m0, s0
                for ci in range(n):
                    c = load_chunk(ci)
                    m = jnp.maximum(m, c)
                    s = s + c
            else:
                def body(ci, carry):
                    m, s = carry
                    c = load_chunk(ci)
                    return jnp.maximum(m, c), s + c
                m, s = lax.fori_loop(0, n, body, (m0, s0),
                                     unroll=max(1, min(unroll, n)))
            max_acc[...] = m
            sum_acc[...] = s

        def fold_last():
            # Masked fold for the ragged last tile.  OOB block reads are
            # undefined, so mask sum -> 0 and max -> -inf, but only for the
            # single straddling chunk; fully-OOB chunks are skipped statically.
            fold_unmasked(n_full)
            if rem_tail > 0:
                c = load_chunk(n_full)
                pos = lax.broadcasted_iota(jnp.int32, c.shape, 2)
                valid = pos < rem_tail
                max_acc[...] = jnp.maximum(max_acc[...],
                                           jnp.where(valid, c, -jnp.inf))
                sum_acc[...] = sum_acc[...] + jnp.where(valid, c, 0.0)

        if not ragged:
            fold_unmasked(n_chunks)          # hot path: no masking anywhere
        elif n_hw == 1:
            fold_last()
        else:
            @pl.when(k < last)
            def _stream():
                fold_unmasked(n_chunks)      # hot path: no masking

            @pl.when(k == last)
            def _tail():
                fold_last()

        @pl.when(k == last)
        def _finalize():
            max_v = jnp.max(max_acc[...], axis=-1)            # (1, C)
            avg_v = jnp.sum(sum_acc[...], axis=-1) * inv_hw   # (1, C)
            w1t = w1t_ref[...].astype(jnp.float32)            # (C, Cr)
            w2t = w2t_ref[...].astype(jnp.float32)            # (Cr, C)
            # se(max) + se(avg) = (relu(max @ W1t) + relu(avg @ W1t)) @ W2t
            # (W2 dot shared via linearity.  Stacking max/avg into one (2, C)
            # dot was considered but skipped: sublane concat of 1-row operands
            # risks Mosaic concatenate alignment restrictions, and the saving
            # is one MXU push per batch element off the streaming path.)
            h = (jnp.maximum(jnp.dot(max_v, w1t,
                                     preferred_element_type=jnp.float32), 0.0)
                 + jnp.maximum(jnp.dot(avg_v, w1t,
                                       preferred_element_type=jnp.float32), 0.0))
            logits = jnp.dot(h, w2t, preferred_element_type=jnp.float32)  # (1, C)
            o_ref[...] = jax.nn.sigmoid(logits)[:, None, :].astype(o_ref.dtype)

    return kernel


def channel_attention(x_nchw, w1, w2, *, block_bytes_target=2 * 1024 * 1024):
    """ChannelAttention forward.

    Args:
      x_nchw: (B, C, H, W) input.
      w1: (C//r, C)  -- Conv2d(C, C//r, 1, bias=False).weight squeezed.
      w2: (C, C//r)  -- Conv2d(C//r, C, 1, bias=False).weight squeezed.
      block_bytes_target: target bytes per streaming input buffer (~2 MiB).

    Returns:
      (B, C, 1, 1) attention map in x's dtype.
    """
    B, C, H, W = x_nchw.shape
    Cr = w1.shape[0]
    HW = H * W
    itemsize = jnp.dtype(x_nchw.dtype).itemsize

    # Spatial tile: multiple of 128 lanes, sized from the per-buffer byte
    # target, clamped to the lane-rounded spatial extent so small feature
    # maps run in a single spatial step.
    hw_pad = -(-HW // _LANE) * _LANE
    thw = (int(block_bytes_target) // max(1, C * itemsize)) // _LANE * _LANE
    thw = max(_LANE, min(thw, hw_pad))
    n_hw = -(-HW // thw)             # cdiv; last block may be ragged

    # No wrapper-side padding pass over the activations (saves a full extra
    # HBM read+write); the kernel masks the ragged last block in place.
    x_flat = x_nchw.reshape(B, C, HW)

    # Pre-transpose the 1x1-conv weights so the kernel never builds w.T.
    w1t = jnp.asarray(w1).T              # (C, Cr)
    w2t = jnp.asarray(w2).T              # (Cr, C)

    # Chunk-fold unroll chosen to bound vreg pressure (~4 live chunks at C=64).
    chunk_vregs = max(1, -(-C // 8))
    unroll = max(1, min(8, 32 // chunk_vregs))

    # 3-deep input buffering only when there are enough spatial steps.
    x_index = lambda b, k: (b, 0, k)
    n_bufs = 2
    if n_hw >= 3:
        try:
            x_spec = pl.BlockSpec((1, C, thw), x_index,
                                  pipeline_mode=pl.Buffered(3))
            n_bufs = 3
        except (TypeError, AttributeError):   # older jax without pipeline_mode
            x_spec = pl.BlockSpec((1, C, thw), x_index)
    else:
        x_spec = pl.BlockSpec((1, C, thw), x_index)

    block_bytes = C * thw * itemsize
    weight_bytes = (w1t.size + w2t.size) * jnp.dtype(w1t.dtype).itemsize
    scratch_bytes = 2 * C * _LANE * 4
    need = n_bufs * block_bytes + 2 * weight_bytes + scratch_bytes + (1 << 18)
    # 2x headroom, capped at 48 MiB so the same tiling is safe on v7x
    # (64 MiB/TC) as well as v5e/v6e (128 MiB).
    vmem_limit = int(min(48 * 1024 * 1024, max(8 * 1024 * 1024, 2 * need)))

    cost = pl.CostEstimate(
        flops=int(2 * B * C * HW + 6 * B * C * Cr),
        transcendentals=int(B * C),
        bytes_accessed=int(B * C * HW * itemsize + weight_bytes
                           + B * C * itemsize),
    )

    out = pl.pallas_call(
        _make_kernel(HW, thw, n_hw, unroll),
        out_shape=jax.ShapeDtypeStruct((B, 1, C), x_nchw.dtype),
        grid_spec=pltpu.PrefetchScalarGridSpec(
            num_scalar_prefetch=0,
            grid=(B, n_hw),
            in_specs=[
                x_spec,
                pl.BlockSpec((C, Cr), lambda b, k: (0, 0)),   # stays resident
                pl.BlockSpec((Cr, C), lambda b, k: (0, 0)),   # stays resident
            ],
            out_specs=pl.BlockSpec((1, 1, C), lambda b, k: (b, 0, 0)),
            scratch_shapes=[
                pltpu.VMEM((1, C, _LANE), jnp.float32),   # running max
                pltpu.VMEM((1, C, _LANE), jnp.float32),   # running sum
            ],
        ),
        compiler_params=pltpu.CompilerParams(
            # Batch sharded across TensorCores (v7x megacore); spatial axis is
            # the sequential reduction.  (For B == 1 on v7x the spatial
            # reduction could instead be split across the two cores with
            # per-core partial (max, sum) outputs; not needed here.)
            dimension_semantics=("parallel", "arbitrary"),
            vmem_limit_bytes=vmem_limit,
        ),
        cost_estimate=cost,
    )(x_flat, w1t, w2t)

    return out.reshape(B, C, 1, 1)


def channel_attention_ref(x, w1, w2):
    """Pure-JAX reference for correctness checking."""
    max_v = jnp.max(x, axis=(2, 3))
    avg_v = jnp.mean(x, axis=(2, 3))

    def se(v):
        return jnp.maximum(v @ w1.T, 0.0) @ w2.T

    return jax.nn.sigmoid(se(max_v) + se(avg_v))[:, :, None, None]


if __name__ == "__main__":
    # Shapes consistent with ChannelAttention(channel=64, reduction=16).
    B, C, reduction = 2, 64, 16
    Cr = C // reduction  # 4

    key = jax.random.PRNGKey(0)
    kx1, kx2, kx3, kx4, k1, k2 = jax.random.split(key, 6)

    # Conv2d weights (bias=False), squeezed from (out, in, 1, 1) to (out, in).
    w1 = jax.random.normal(k1, (Cr, C), dtype=jnp.float32) * 0.1
    w2 = jax.random.normal(k2, (C, Cr), dtype=jnp.float32) * 0.1

    def check(name, x, **kw):
        out = jax.block_until_ready(channel_attention(x, w1, w2, **kw))
        ref = channel_attention_ref(x, w1, w2)
        assert out.shape == (x.shape[0], x.shape[1], 1, 1), name
        assert jnp.allclose(out, ref, atol=1e-5, rtol=1e-5), f"{name} mismatch"

    # 1) single spatial step, lane-aligned (32*32 = 1024), static chunk fold.
    check("aligned-1step", jax.random.normal(kx1, (B, C, 32, 32), jnp.float32))
    # 2) single step with a ragged straddling chunk (10*10 = 100 < 128 lanes).
    check("ragged-1step", jax.random.normal(kx2, (B, C, 10, 10), jnp.float32))
    # 3) multi-step non-ragged reduction with fori_loop chunk fold
    #    (thw = 2048 -> 16 chunks, 2 spatial steps).
    check("aligned-multistep",
          jax.random.normal(kx3, (B, C, 64, 64), jnp.float32),
          block_bytes_target=2048 * C * 4)
    # 4) multi-step reduction with ragged last block + straddle chunk and
    #    >= 3 steps (exercises pl.Buffered(3) input pipelining).
    check("ragged-multistep",
          jax.random.normal(kx4, (B, C, 20, 20), jnp.float32),
          block_bytes_target=128 * C * 4)

    print("KERNEL_OK")
</pallas_src>

<mosaic_0001>
module attributes {stable_mosaic.version = 11 : i64} {
  func.func @kernel(%arg0: i32, %arg1: i32, %arg2: memref<1x64x1024xf32, #tpu.memory_space<vmem>>, %arg3: memref<64x4xf32, #tpu.memory_space<vmem>>, %arg4: memref<4x64xf32, #tpu.memory_space<vmem>>, %arg5: memref<1x1x64xf32, #tpu.memory_space<vmem>>, %arg6: memref<1x64x128xf32, #tpu.memory_space<vmem>>, %arg7: memref<1x64x128xf32, #tpu.memory_space<vmem>>) attributes {dimension_semantics = [#tpu.dimension_semantics<parallel>, #tpu.dimension_semantics<arbitrary>], iteration_bounds = array<i64: 2, 1>, scalar_prefetch = 0 : i64, scratch_operands = 2 : i64, tpu.core_type = #tpu.core_type<tc>, window_params = [{transform_indices = @transform_0, window_bounds = array<i64: 1, 64, 1024>}, {pipeline_mode = #tpu.pipeline_mode<synchronous>, transform_indices = @transform_1, window_bounds = array<i64: 64, 4>}, {pipeline_mode = #tpu.pipeline_mode<synchronous>, transform_indices = @transform_2, window_bounds = array<i64: 4, 64>}, {transform_indices = @transform_3, window_bounds = array<i64: 1, 1, 64>}]} {
    %c0_i32 = arith.constant 0 : i32
    %0 = arith.cmpi eq, %arg1, %c0_i32 : i32
    %1 = arith.extui %0 : i1 to i32
    %c0_i32_0 = arith.constant 0 : i32
    %2 = arith.cmpi ne, %1, %c0_i32_0 : i32
    scf.if %2 {
      %cst = arith.constant 0xFF800000 : f32
      %34 = vector.broadcast %cst : f32 to vector<1x64x128xf32>
      %c0_31 = arith.constant 0 : index
      %c0_32 = arith.constant 0 : index
      %c0_33 = arith.constant 0 : index
      %35 = vector.load %arg6[%c0_31, %c0_32, %c0_33] : memref<1x64x128xf32, #tpu.memory_space<vmem>>, vector<1x64x128xf32>
      tpu.vector_store %arg6[%c0_31, %c0_32, %c0_33], %34 {strides = array<i32>} : memref<1x64x128xf32, #tpu.memory_space<vmem>>, vector<1x64x128xf32>,
      %cst_34 = arith.constant 0.000000e+00 : f32
      %36 = vector.broadcast %cst_34 : f32 to vector<1x64x128xf32>
      %c0_35 = arith.constant 0 : index
      %c0_36 = arith.constant 0 : index
      %c0_37 = arith.constant 0 : index
      %37 = vector.load %arg7[%c0_35, %c0_36, %c0_37] : memref<1x64x128xf32, #tpu.memory_space<vmem>>, vector<1x64x128xf32>
      tpu.vector_store %arg7[%c0_35, %c0_36, %c0_37], %36 {strides = array<i32>} : memref<1x64x128xf32, #tpu.memory_space<vmem>>, vector<1x64x128xf32>,
    } else {
    }
    %c0 = arith.constant 0 : index
    %c0_1 = arith.constant 0 : index
    %c0_2 = arith.constant 0 : index
    %3 = vector.load %arg6[%c0, %c0_1, %c0_2] : memref<1x64x128xf32, #tpu.memory_space<vmem>>, vector<1x64x128xf32>
    %c0_3 = arith.constant 0 : index
    %c0_4 = arith.constant 0 : index
    %c0_5 = arith.constant 0 : index
    %4 = vector.load %arg7[%c0_3, %c0_4, %c0_5] : memref<1x64x128xf32, #tpu.memory_space<vmem>>, vector<1x64x128xf32>
    %c0_6 = arith.constant 0 : index
    %c0_7 = arith.constant 0 : index
    %c0_8 = arith.constant 0 : index
    %5 = vector.load %arg2[%c0_6, %c0_7, %c0_8] : memref<1x64x1024xf32, #tpu.memory_space<vmem>>, vector<1x64x128xf32>
    %6 = arith.maximumf %3, %5 : vector<1x64x128xf32>
    %7 = arith.addf %4, %5 : vector<1x64x128xf32>
    %c0_9 = arith.constant 0 : index
    %c0_10 = arith.constant 0 : index
    %c128 = arith.constant 128 : index
    %8 = vector.load %arg2[%c0_9, %c0_10, %c128] : memref<1x64x1024xf32, #tpu.memory_space<vmem>>, vector<1x64x128xf32>
    %9 = arith.maximumf %6, %8 : vector<1x64x128xf32>
    %10 = arith.addf %7, %8 : vector<1x64x128xf32>
    %c0_11 = arith.constant 0 : index
    %c0_12 = arith.constant 0 : index
    %c256 = arith.constant 256 : index
    %11 = vector.load %arg2[%c0_11, %c0_12, %c256] : memref<1x64x1024xf32, #tpu.memory_space<vmem>>, vector<1x64x128xf32>
    %12 = arith.maximumf %9, %11 : vector<1x64x128xf32>
    %13 = arith.addf %10, %11 : vector<1x64x128xf32>
    %c0_13 = arith.constant 0 : index
    %c0_14 = arith.constant 0 : index
    %c384 = arith.constant 384 : index
    %14 = vector.load %arg2[%c0_13, %c0_14, %c384] : memref<1x64x1024xf32, #tpu.memory_space<vmem>>, vector<1x64x128xf32>
    %15 = arith.maximumf %12, %14 : vector<1x64x128xf32>
    %16 = arith.addf %13, %14 : vector<1x64x128xf32>
    %c0_15 = arith.constant 0 : index
    %c0_16 = arith.constant 0 : index
    %c512 = arith.constant 512 : index
    %17 = vector.load %arg2[%c0_15, %c0_16, %c512] : memref<1x64x1024xf32, #tpu.memory_space<vmem>>, vector<1x64x128xf32>
    %18 = arith.maximumf %15, %17 : vector<1x64x128xf32>
    %19 = arith.addf %16, %17 : vector<1x64x128xf32>
    %c0_17 = arith.constant 0 : index
    %c0_18 = arith.constant 0 : index
    %c640 = arith.constant 640 : index
    %20 = vector.load %arg2[%c0_17, %c0_18, %c640] : memref<1x64x1024xf32, #tpu.memory_space<vmem>>, vector<1x64x128xf32>
    %21 = arith.maximumf %18, %20 : vector<1x64x128xf32>
    %22 = arith.addf %19, %20 : vector<1x64x128xf32>
    %c0_19 = arith.constant 0 : index
    %c0_20 = arith.constant 0 : index
    %c768 = arith.constant 768 : index
    %23 = vector.load %arg2[%c0_19, %c0_20, %c768] : memref<1x64x1024xf32, #tpu.memory_space<vmem>>, vector<1x64x128xf32>
    %24 = arith.maximumf %21, %23 : vector<1x64x128xf32>
    %25 = arith.addf %22, %23 : vector<1x64x128xf32>
    %c0_21 = arith.constant 0 : index
    %c0_22 = arith.constant 0 : index
    %c896 = arith.constant 896 : index
    %26 = vector.load %arg2[%c0_21, %c0_22, %c896] : memref<1x64x1024xf32, #tpu.memory_space<vmem>>, vector<1x64x128xf32>
    %27 = arith.maximumf %24, %26 : vector<1x64x128xf32>
    %28 = arith.addf %25, %26 : vector<1x64x128xf32>
    %c0_23 = arith.constant 0 : index
    %c0_24 = arith.constant 0 : index
    %c0_25 = arith.constant 0 : index
    %29 = vector.load %arg6[%c0_23, %c0_24, %c0_25] : memref<1x64x128xf32, #tpu.memory_space<vmem>>, vector<1x64x128xf32>
    tpu.vector_store %arg6[%c0_23, %c0_24, %c0_25], %27 {strides = array<i32>} : memref<1x64x128xf32, #tpu.memory_space<vmem>>, vector<1x64x128xf32>,
    %c0_26 = arith.constant 0 : index
    %c0_27 = arith.constant 0 : index
    %c0_28 = arith.constant 0 : index
    %30 = vector.load %arg7[%c0_26, %c0_27, %c0_28] : memref<1x64x128xf32, #tpu.memory_space<vmem>>, vector<1x64x128xf32>
    tpu.vector_store %arg7[%c0_26, %c0_27, %c0_28], %28 {strides = array<i32>} : memref<1x64x128xf32, #tpu.memory_space<vmem>>, vector<1x64x128xf32>,
    %c0_i32_29 = arith.constant 0 : i32
    %31 = arith.cmpi eq, %arg1, %c0_i32_29 : i32
    %32 = arith.extui %31 : i1 to i32
    %c0_i32_30 = arith.constant 0 : i32
    %33 = arith.cmpi ne, %32, %c0_i32_30 : i32
    scf.if %33 {
      %c0_31 = arith.constant 0 : index
      %c0_32 = arith.constant 0 : index
      %c0_33 = arith.constant 0 : index
      %34 = vector.load %arg6[%c0_31, %c0_32, %c0_33] : memref<1x64x128xf32, #tpu.memory_space<vmem>>, vector<1x64x128xf32>
      %cst = arith.constant dense<0xFF800000> : vector<1x64xf32>
      %35 = vector.multi_reduction <maximumf>, %34, %cst [2] : vector<1x64x128xf32> to vector<1x64xf32>
      %c0_34 = arith.constant 0 : index
      %c0_35 = arith.constant 0 : index
      %c0_36 = arith.constant 0 : index
      %36 = vector.load %arg7[%c0_34, %c0_35, %c0_36] : memref<1x64x128xf32, #tpu.memory_space<vmem>>, vector<1x64x128xf32>
      %cst_37 = arith.constant dense<0.000000e+00> : vector<1x64xf32>
      %37 = vector.multi_reduction <add>, %36, %cst_37 [2] : vector<1x64x128xf32> to vector<1x64xf32>
      %cst_38 = arith.constant 9.765625E-4 : f32
      %38 = vector.broadcast %cst_38 : f32 to vector<1x64xf32>
      %39 = arith.mulf %37, %38 : vector<1x64xf32>
      %c0_39 = arith.constant 0 : index
      %c0_40 = arith.constant 0 : index
      %40 = vector.load %arg3[%c0_39, %c0_40] : memref<64x4xf32, #tpu.memory_space<vmem>>, vector<64x4xf32>
      %c0_41 = arith.constant 0 : index
      %c0_42 = arith.constant 0 : index
      %41 = vector.load %arg4[%c0_41, %c0_42] : memref<4x64xf32, #tpu.memory_space<vmem>>, vector<4x64xf32>
      %cst_43 = arith.constant dense<0.000000e+00> : vector<1x4xf32>
      %42 = tpu.matmul %35, %40, %cst_43 {dimension_numbers = #tpu.dot_dimension_numbers<[1], [0], [0], [1], [0, 0, 1, 1], [], []>} : vector<1x64xf32>, vector<64x4xf32>, vector<1x4xf32> -> vector<1x4xf32>
      %cst_44 = arith.constant 0.000000e+00 : f32
      %43 = vector.broadcast %cst_44 : f32 to vector<1x4xf32>
      %44 = arith.maximumf %42, %43 : vector<1x4xf32>
      %cst_45 = arith.constant dense<0.000000e+00> : vector<1x4xf32>
      %45 = tpu.matmul %39, %40, %cst_45 {dimension_numbers = #tpu.dot_dimension_numbers<[1], [0], [0], [1], [0, 0, 1, 1], [], []>} : vector<1x64xf32>, vector<64x4xf32>, vector<1x4xf32> -> vector<1x4xf32>
      %cst_46 = arith.constant 0.000000e+00 : f32
      %46 = vector.broadcast %cst_46 : f32 to vector<1x4xf32>
      %47 = arith.maximumf %45, %46 : vector<1x4xf32>
      %48 = arith.addf %44, %47 : vector<1x4xf32>
      %cst_47 = arith.constant dense<0.000000e+00> : vector<1x64xf32>
      %49 = tpu.matmul %48, %41, %cst_47 {dimension_numbers = #tpu.dot_dimension_numbers<[1], [0], [0], [1], [0, 0, 1, 1], [], []>} : vector<1x4xf32>, vector<4x64xf32>, vector<1x64xf32> -> vector<1x64xf32>
      %50 = arith.negf %49 : vector<1x64xf32>
      %51 = math.exp %50 : vector<1x64xf32>
      %cst_48 = arith.constant 1.000000e+00 : f32
      %52 = vector.broadcast %cst_48 : f32 to vector<1x64xf32>
      %53 = arith.addf %52, %51 : vector<1x64xf32>
      %54 = arith.divf %52, %53 : vector<1x64xf32>
      %55 = vector.shape_cast %54 : vector<1x64xf32> to vector<1x1x64xf32>
      %c0_49 = arith.constant 0 : index
      %c0_50 = arith.constant 0 : index
      %c0_51 = arith.constant 0 : index
      %56 = vector.load %arg5[%c0_49, %c0_50, %c0_51] : memref<1x1x64xf32, #tpu.memory_space<vmem>>, vector<1x1x64xf32>
      tpu.vector_store %arg5[%c0_49, %c0_50, %c0_51], %55 {strides = array<i32>} : memref<1x1x64xf32, #tpu.memory_space<vmem>>, vector<1x1x64xf32>,
    } else {
    }
    return
  }
  func.func @transform_0(%arg0: i32, %arg1: i32) -> (i32, i32, i32) {
    %c0_i32 = arith.constant 0 : i32
    %c0_i32_0 = arith.constant 0 : i32
    return %arg0, %c0_i32, %arg1 : i32, i32, i32
  }
  func.func @transform_1(%arg0: i32, %arg1: i32) -> (i32, i32) {
    %c0_i32 = arith.constant 0 : i32
    %c0_i32_0 = arith.constant 0 : i32
    %c0_i32_1 = arith.constant 0 : i32
    return %c0_i32, %c0_i32_0 : i32, i32
  }
  func.func @transform_2(%arg0: i32, %arg1: i32) -> (i32, i32) {
    %c0_i32 = arith.constant 0 : i32
    %c0_i32_0 = arith.constant 0 : i32
    %c0_i32_1 = arith.constant 0 : i32
    return %c0_i32, %c0_i32_0 : i32, i32
  }
  func.func @transform_3(%arg0: i32, %arg1: i32) -> (i32, i32, i32) {
    %c0_i32 = arith.constant 0 : i32
    %c0_i32_0 = arith.constant 0 : i32
    %c0_i32_1 = arith.constant 0 : i32
    return %arg0, %c0_i32, %c0_i32_0 : i32, i32, i32
  }
}

</mosaic_0001>

<llo_original>
// kernel: tpu_custom_call.1
$region0: #{tpu_custom_call.1}
  #allocation0 [shape = 'u32[]', space=smem, size = 0x4, offset = 0x4, fixed_abs, tag = 'smem constant byte address 0x4 - core index']
  #allocation1 [shape = 'u32[144,128]{1,0:T(1,128)}', space=vmem, size = 0x12000, scoped, tag = 'internal scratch']
  #allocation2 [shape = 'f32[1,64,128]{2,1,0:T(8,128)}', space=vmem, size = 0x8000, scoped, tag = 'scratch operand']
  #allocation3 [shape = 'f32[1,64,128]{2,1,0:T(8,128)}', space=vmem, size = 0x8000, scoped, tag = 'scratch operand']
  %s0 = inlined_call_operand.hbm [shape: f32[2,64,1024], index: 0, kind: input, shape index: {}]
  %s1 = inlined_call_operand.vmem [shape: f32[64,4], index: 1, kind: input, shape index: {}]
  %s2 = inlined_call_operand.vmem [shape: f32[4,64], index: 2, kind: input, shape index: {}]
  %s3 = inlined_call_operand.hbm [shape: f32[2,1,64], index: 3, kind: output, shape index: {}]
  %s4 = sld [smem:[#allocation0]]
  $region57: #{tpu_custom_call.1} parent=0
    _
  %s6 = ssub.s32 1, %s4
  %s7 = scalar_select 0, %s6, %s4
  $region1: #{tpu_custom_call.1} parent=0
    #allocation4 [shape = 'u8[524288]{0}', space=vmem, size = 0x80000, scoped, tag = 'input window, operand 0']
    #allocation5 [shape = 's32[2]{0}', space=sflag, size = 0x8, scoped, tag = 'scoped memory for tpu_custom_call.1']
    #allocation6 [shape = 's32[2]{0}', space=sflag, size = 0x8, scoped, tag = 'scoped memory for tpu_custom_call.1']
    #allocation7 [shape = 'u8[1024]{0}', space=vmem, size = 0x400, scoped, tag = 'output window, operand 0']
    %8 = vsyncpa [#allocation5], 0
    %s9 = scalar_lea.sflag [#allocation5], 1
    %10 = vsyncpa %s9, 0
    %11 = vsyncpa [#allocation6], 0
    %s12 = scalar_lea.sflag [#allocation6], 1
    %13 = vsyncpa %s12, 0
    loop: start=0, step=1, limit=4
    $region2: #{tpu_custom_call.1} parent=1 // loop_pre_header
      _
    $region3: #{tpu_custom_call.1} parent=1 // loop_header
      %s15 = sphi 0, %s19
      %p16 = scmp.ge.s32.totalorder %s15, 4
      %s22 = sphi 0, %s34
      %s23 = sphi 0, %s30
      %s24 = sphi 0, %s22
      %s25 = sphi 0, %s23
      %s26 = sphi 0, %s24
      %s27 = sphi 0, %s25
      %s39 = sphi 0, %s41
      %s42 = sphi 0, %s39
      %s43 = sphi 0, %s42
      %s59 = sphi 0, %s43
      %s63 = sphi 0, %s63
      %s65 = sphi 0, %s63
      %s66 = sphi 0, %s65
      %s80 = sphi 0, %s66
      %s84 = sphi 0, %s84
      %s86 = sphi 0, %s84
      %s87 = sphi 0, %s86
      %s101 = sphi 0, %s87
      %s107 = sphi 0, %s109
      %s110 = sphi 0, %s107
      %s111 = sphi 0, %s110
      %s127 = sphi 0, %s111
    $region4: #{tpu_custom_call.1} parent=1 // loop_header_branch
      %18 = sbr.rel (%p16) target = $region8
    $region5: #{tpu_custom_call.1} parent=1 // loop_body
      %s20 = ssub.s32 %s15, 1
      %s21 = ssub.s32 %s15, 2
      %s28 = sadd.s32 1, %s23
      %p29 = scmp.ge.s32.totalorder %s28, 1
      %s30 = scalar_select %p29, 0, %s28
      %s31 = sadd.s32 1, %s22
      %s32 = scalar_select %p29, %s31, %s22
      %p33 = scmp.ge.s32.totalorder %s32, 2
      %s34 = scalar_select %p33, 0, %s32
      %s35 = ssub.s32 %s22, %s34
      %s36 = ssub.s32 %s23, %s30
      %s37 = sor.u32 %s35, %s36
      %p38 = scmp.eq.s32.totalorder %s37, 0
      %s40 = sadd.s32 %s39, 1
      %s41 = scalar_select %p38, %s39, %s40
      %p44 = pneg %p38
      %p45 = scmp.eq.s32.totalorder %s15, 1
      %p46 = por %p44, %p45
      %p47 = scmp.ne.s32.totalorder %s39, %s42
      %p48 = scmp.eq.s32.totalorder %s15, 0
      %p49 = por %p47, %p48
      %p50 = scmp.ne.s32.totalorder %s39, %s42
      %p51 = scmp.eq.s32.totalorder %s20, 1
      %p52 = por %p50, %p51
      %p53 = scmp.ne.s32.totalorder %s42, %s43
      %p54 = scmp.eq.s32.totalorder %s20, 0
      %p55 = por %p53, %p54
      %p56 = scmp.ne.s32.totalorder %s42, %s43
      %p57 = scmp.eq.s32.totalorder %s21, 1
      %p58 = por %p56, %p57
      %p60 = scmp.ne.s32.totalorder %s43, %s59
      %p61 = scmp.eq.s32.totalorder %s21, 0
      %p62 = por %p60, %p61
      %s64 = sadd.s32 %s63, 1
      %p67 = scmp.eq.s32.totalorder %s15, 1
      %p68 = scmp.ne.s32.totalorder %s63, %s65
      %p69 = scmp.eq.s32.totalorder %s15, 0
      %p70 = por %p68, %p69
      %p71 = scmp.ne.s32.totalorder %s63, %s65
      %p72 = scmp.eq.s32.totalorder %s20, 1
      %p73 = por %p71, %p72
      %p74 = scmp.ne.s32.totalorder %s65, %s66
      %p75 = scmp.eq.s32.totalorder %s20, 0
      %p76 = por %p74, %p75
      %p77 = scmp.ne.s32.totalorder %s65, %s66
      %p78 = scmp.eq.s32.totalorder %s21, 1
      %p79 = por %p77, %p78
      %p81 = scmp.ne.s32.totalorder %s66, %s80
      %p82 = scmp.eq.s32.totalorder %s21, 0
      %p83 = por %p81, %p82
      %s85 = sadd.s32 %s84, 1
      %p88 = scmp.eq.s32.totalorder %s15, 1
      %p89 = scmp.ne.s32.totalorder %s84, %s86
      %p90 = scmp.eq.s32.totalorder %s15, 0
      %p91 = por %p89, %p90
      %p92 = scmp.ne.s32.totalorder %s84, %s86
      %p93 = scmp.eq.s32.totalorder %s20, 1
      %p94 = por %p92, %p93
      %p95 = scmp.ne.s32.totalorder %s86, %s87
      %p96 = scmp.eq.s32.totalorder %s20, 0
      %p97 = por %p95, %p96
      %p98 = scmp.ne.s32.totalorder %s86, %s87
      %p99 = scmp.eq.s32.totalorder %s21, 1
      %p100 = por %p98, %p99
      %p102 = scmp.ne.s32.totalorder %s87, %s101
      %p103 = scmp.eq.s32.totalorder %s21, 0
      %p104 = por %p102, %p103
      %s105 = ssub.s32 %s22, %s34
      %p106 = scmp.eq.s32.totalorder %s105, 0
      %s108 = sadd.s32 %s107, 1
      %s109 = scalar_select %p106, %s107, %s108
      %p112 = pneg %p106
      %p113 = scmp.eq.s32.totalorder %s15, 1
      %p114 = por %p112, %p113
      %p115 = scmp.ne.s32.totalorder %s107, %s110
      %p116 = scmp.eq.s32.totalorder %s15, 0
      %p117 = por %p115, %p116
      %p118 = scmp.ne.s32.totalorder %s107, %s110
      %p119 = scmp.eq.s32.totalorder %s20, 1
      %p120 = por %p118, %p119
      %p121 = scmp.ne.s32.totalorder %s110, %s111
      %p122 = scmp.eq.s32.totalorder %s20, 0
      %p123 = por %p121, %p122
      %p124 = scmp.ne.s32.totalorder %s110, %s111
      %p125 = scmp.eq.s32.totalorder %s21, 1
      %p126 = por %p124, %p125
      %p128 = scmp.ne.s32.totalorder %s111, %s127
      %p129 = scmp.eq.s32.totalorder %s21, 0
      %p130 = por %p128, %p129
      %p131 = scmp.le.s32.totalorder 1, %s15
      %p132 = scmp.lt.s32.totalorder %s15, 3
      %p133 = pnand %p131, %p132
      %p134 = pneg %p133
      // Predicated region
      $region9: #{tpu_custom_call.1} parent=5 // pred_check
        _
      $region10: #{tpu_custom_call.1} parent=5 // pred_check_branch
        %136 = sbr.rel (%p133) target = $region12
      $region11: #{tpu_custom_call.1} parent=5 // pred_region
        %s137 = ssub.s32 %s15, 1
        // Predicated region
        $region13: #{tpu_custom_call.1} parent=11 // pred_check
          %p138 = pneg %p76
        $region14: #{tpu_custom_call.1} parent=11 // pred_check_branch
          %140 = sbr.rel (%p138) target = $region16
        $region15: #{tpu_custom_call.1} parent=11 // pred_region
          _
        $region16: #{tpu_custom_call.1} parent=11 // pred_fallthru
          _
        // Predicated region
        $region17: #{tpu_custom_call.1} parent=11 // pred_check
          %p141 = pneg %p97
        $region18: #{tpu_custom_call.1} parent=11 // pred_check_branch
          %143 = sbr.rel (%p141) target = $region20
        $region19: #{tpu_custom_call.1} parent=11 // pred_region
          _
        $region20: #{tpu_custom_call.1} parent=11 // pred_fallthru
          _
      $region12: #{tpu_custom_call.1} parent=5 // pred_fallthru
        _
      %p144 = scmp.lt.s32.totalorder %s15, 2
      // Predicated region
      $region21: #{tpu_custom_call.1} parent=5 // pred_check
        %p145 = pneg %p144
      $region22: #{tpu_custom_call.1} parent=5 // pred_check_branch
        %147 = sbr.rel (%p145) target = $region24
      $region23: #{tpu_custom_call.1} parent=5 // pred_region
        // Predicated region
        $region25: #{tpu_custom_call.1} parent=23 // pred_check
          %p148 = pneg %p49
        $region26: #{tpu_custom_call.1} parent=23 // pred_check_branch
          %150 = sbr.rel (%p148) target = $region28
        $region27: #{tpu_custom_call.1} parent=23 // pred_region
          %s151 = sand.u32 %s39, 1
          %s152 = scalar_lea.sflag [#allocation5], %s151
          %s153 = sand.u32 %s39, 1
          %s154 = smul.addr %s153, 512
          %s155 = scalar_lea.vmem [#allocation4], %s154
          %s156 = smul.u32 8, %s23
          %s158 = ssub.s32 8192, 8192
          %159 = vsyncadd %s152, %s158
          %s160 = smul.addr %s22, 64
          %s161 = sadd.s32 %s156, %s160
          %s162 = smul.addr %s161, 128
          %s163 = scalar_lea.hbm %s0, %s162
          %s164 = sshll.u32 %s155, 4
          %s165 = int_to_ptr.vmem [resolvable:$true] %s164
          %170 = dma.hbm_to_vmem [thread:$0]  %s163, 8192, %s165, %s152, 1024, 1024, 64
        $region28: #{tpu_custom_call.1} parent=23 // pred_fallthru
          _
      $region24: #{tpu_custom_call.1} parent=5 // pred_fallthru
        _
      %p171 = scmp.le.s32.totalorder 1, %s15
      %p172 = scmp.lt.s32.totalorder %s15, 3
      %p173 = pnand %p171, %p172
      %p174 = pneg %p173
      // Predicated region
      $region29: #{tpu_custom_call.1} parent=5 // pred_check
        _
      $region30: #{tpu_custom_call.1} parent=5 // pred_check_branch
        %176 = sbr.rel (%p173) target = $region32
      $region31: #{tpu_custom_call.1} parent=5 // pred_region
        %s177 = ssub.s32 %s15, 1
        %s178 = sand.u32 %s42, 1
        %s179 = scalar_lea.sflag [#allocation5], %s178
        %s180 = sand.u32 %s42, 1
        %s181 = smul.addr %s180, 512
        %s182 = scalar_lea.vmem [#allocation4], %s181
        // Predicated region
        $region33: #{tpu_custom_call.1} parent=31 // pred_check
          %p183 = pneg %p55
        $region34: #{tpu_custom_call.1} parent=31 // pred_check_branch
          %185 = sbr.rel (%p183) target = $region36
        $region35: #{tpu_custom_call.1} parent=31 // pred_region
          %186 = dma.done %s179, 8192
        $region36: #{tpu_custom_call.1} parent=31 // pred_fallthru
          _
        %s187 = sand.u32 %s42, 1
        %s188 = scalar_lea.sflag [#allocation5], %s187
        %s189 = sand.u32 %s42, 1
        %s190 = smul.addr %s189, 512
        %s191 = scalar_lea.vmem [#allocation4], %s190
        %p192 = pneg %p55
        %p193 = pneg %p52
        %p194 = pneg %p76
        %p195 = pneg %p73
        %p196 = pneg %p97
        %p197 = pneg %p94
        %p198 = pneg %p123
        %p199 = pneg %p120
        %s200 = sand.u32 %s110, 1
        %s201 = scalar_lea.sflag [#allocation6], %s200
        %s202 = sand.u32 %s110, 1
        %s203 = scalar_lea.vmem [#allocation7], %s202
        %s204 = smul.u32 8, %s25
        %p205 = scmp.eq.s32.totalorder %s25, 0
        // Predicated region
        $region37: #{tpu_custom_call.1} parent=31 // pred_check
          %p206 = pneg %p205
        $region38: #{tpu_custom_call.1} parent=31 // pred_check_branch
          %208 = sbr.rel (%p206) target = $region40
        $region39: #{tpu_custom_call.1} parent=31 // pred_region
          %209 = vst [vmem:[#allocation2] sm:$0xff] -inf
          %210 = vst [vmem:[#allocation2 + $0x8] sm:$0xff] -inf
          %211 = vst [vmem:[#allocation2 + $0x10] sm:$0xff] -inf
          %212 = vst [vmem:[#allocation2 + $0x18] sm:$0xff] -inf
          %213 = vst [vmem:[#allocation2 + $0x20] sm:$0xff] -inf
          %214 = vst [vmem:[#allocation2 + $0x28] sm:$0xff] -inf
          %215 = vst [vmem:[#allocation2 + $0x30] sm:$0xff] -inf
          %216 = vst [vmem:[#allocation2 + $0x38] sm:$0xff] -inf
          %217 = vst [vmem:[#allocation3] sm:$0xff] 0.0
          %218 = vst [vmem:[#allocation3 + $0x8] sm:$0xff] 0.0
          %219 = vst [vmem:[#allocation3 + $0x10] sm:$0xff] 0.0
          %220 = vst [vmem:[#allocation3 + $0x18] sm:$0xff] 0.0
          %221 = vst [vmem:[#allocation3 + $0x20] sm:$0xff] 0.0
          %222 = vst [vmem:[#allocation3 + $0x28] sm:$0xff] 0.0
          %223 = vst [vmem:[#allocation3 + $0x30] sm:$0xff] 0.0
          %224 = vst [vmem:[#allocation3 + $0x38] sm:$0xff] 0.0
        $region40: #{tpu_custom_call.1} parent=31 // pred_fallthru
          _
        %v225 = vld [vmem:[#allocation2] sm:$0xff]
        %v226 = vld [vmem:[#allocation2 + $0x8] sm:$0xff]
        %v227 = vld [vmem:[#allocation2 + $0x10] sm:$0xff]
        %v228 = vld [vmem:[#allocation2 + $0x18] sm:$0xff]
        %v229 = vld [vmem:[#allocation2 + $0x20] sm:$0xff]
        %v230 = vld [vmem:[#allocation2 + $0x28] sm:$0xff]
        %v231 = vld [vmem:[#allocation2 + $0x30] sm:$0xff]
        %v232 = vld [vmem:[#allocation2 + $0x38] sm:$0xff]
        %v233 = vld [vmem:[#allocation3] sm:$0xff]
        %v234 = vld [vmem:[#allocation3 + $0x8] sm:$0xff]
        %v235 = vld [vmem:[#allocation3 + $0x10] sm:$0xff]
        %v236 = vld [vmem:[#allocation3 + $0x18] sm:$0xff]
        %v237 = vld [vmem:[#allocation3 + $0x20] sm:$0xff]
        %v238 = vld [vmem:[#allocation3 + $0x28] sm:$0xff]
        %v239 = vld [vmem:[#allocation3 + $0x30] sm:$0xff]
        %v240 = vld [vmem:[#allocation3 + $0x38] sm:$0xff]
        %v241 = vld [vmem:[%s182] sm:$0xff]
        %v242 = vld [vmem:[%s182 + $0x40] sm:$0xff]
        %v243 = vld [vmem:[%s182 + $0x80] sm:$0xff]
        %v244 = vld [vmem:[%s182 + $0xc0] sm:$0xff]
        %v245 = vld [vmem:[%s182 + $0x100] sm:$0xff]
        %v246 = vld [vmem:[%s182 + $0x140] sm:$0xff]
        %v247 = vld [vmem:[%s182 + $0x180] sm:$0xff]
        %v248 = vld [vmem:[%s182 + $0x1c0] sm:$0xff]
        %v249 = vmax.f32 %v225, %v241
        %v250 = vmax.f32 %v226, %v242
        %v251 = vmax.f32 %v227, %v243
        %v252 = vmax.f32 %v228, %v244
        %v253 = vmax.f32 %v229, %v245
        %v254 = vmax.f32 %v230, %v246
        %v255 = vmax.f32 %v231, %v247
        %v256 = vmax.f32 %v232, %v248
        %v257 = vadd.f32 %v233, %v241
        %v258 = vadd.f32 %v234, %v242
        %v259 = vadd.f32 %v235, %v243
        %v260 = vadd.f32 %v236, %v244
        %v261 = vadd.f32 %v237, %v245
        %v262 = vadd.f32 %v238, %v246
        %v263 = vadd.f32 %v239, %v247
        %v264 = vadd.f32 %v240, %v248
        %v265 = vld [vmem:[%s182 + $0x8] sm:$0xff]
        %v266 = vld [vmem:[%s182 + $0x48] sm:$0xff]
        %v267 = vld [vmem:[%s182 + $0x88] sm:$0xff]
        %v268 = vld [vmem:[%s182 + $0xc8] sm:$0xff]
        %v269 = vld [vmem:[%s182 + $0x108] sm:$0xff]
        %v270 = vld [vmem:[%s182 + $0x148] sm:$0xff]
        %v271 = vld [vmem:[%s182 + $0x188] sm:$0xff]
        %v272 = vld [vmem:[%s182 + $0x1c8] sm:$0xff]
        %v273 = vmax.f32 %v249, %v265
        %v274 = vmax.f32 %v250, %v266
        %v275 = vmax.f32 %v251, %v267
        %v276 = vmax.f32 %v252, %v268
        %v277 = vmax.f32 %v253, %v269
        %v278 = vmax.f32 %v254, %v270
        %v279 = vmax.f32 %v255, %v271
        %v280 = vmax.f32 %v256, %v272
        %v281 = vadd.f32 %v257, %v265
        %v282 = vadd.f32 %v258, %v266
        %v283 = vadd.f32 %v259, %v267
        %v284 = vadd.f32 %v260, %v268
        %v285 = vadd.f32 %v261, %v269
        %v286 = vadd.f32 %v262, %v270
        %v287 = vadd.f32 %v263, %v271
        %v288 = vadd.f32 %v264, %v272
        %v289 = vld [vmem:[%s182 + $0x10] sm:$0xff]
        %v290 = vld [vmem:[%s182 + $0x50] sm:$0xff]
        %v291 = vld [vmem:[%s182 + $0x90] sm:$0xff]
        %v292 = vld [vmem:[%s182 + $0xd0] sm:$0xff]
        %v293 = vld [vmem:[%s182 + $0x110] sm:$0xff]
        %v294 = vld [vmem:[%s182 + $0x150] sm:$0xff]
        %v295 = vld [vmem:[%s182 + $0x190] sm:$0xff]
        %v296 = vld [vmem:[%s182 + $0x1d0] sm:$0xff]
        %v297 = vmax.f32 %v273, %v289
        %v298 = vmax.f32 %v274, %v290
        %v299 = vmax.f32 %v275, %v291
        %v300 = vmax.f32 %v276, %v292
        %v301 = vmax.f32 %v277, %v293
        %v302 = vmax.f32 %v278, %v294
        %v303 = vmax.f32 %v279, %v295
        %v304 = vmax.f32 %v280, %v296
        %v305 = vadd.f32 %v281, %v289
        %v306 = vadd.f32 %v282, %v290
        %v307 = vadd.f32 %v283, %v291
        %v308 = vadd.f32 %v284, %v292
        %v309 = vadd.f32 %v285, %v293
        %v310 = vadd.f32 %v286, %v294
        %v311 = vadd.f32 %v287, %v295
        %v312 = vadd.f32 %v288, %v296
        %v313 = vld [vmem:[%s182 + $0x18] sm:$0xff]
        %v314 = vld [vmem:[%s182 + $0x58] sm:$0xff]
        %v315 = vld [vmem:[%s182 + $0x98] sm:$0xff]
        %v316 = vld [vmem:[%s182 + $0xd8] sm:$0xff]
        %v317 = vld [vmem:[%s182 + $0x118] sm:$0xff]
        %v318 = vld [vmem:[%s182 + $0x158] sm:$0xff]
        %v319 = vld [vmem:[%s182 + $0x198] sm:$0xff]
        %v320 = vld [vmem:[%s182 + $0x1d8] sm:$0xff]
        %v321 = vmax.f32 %v297, %v313
        %v322 = vmax.f32 %v298, %v314
        %v323 = vmax.f32 %v299, %v315
        %v324 = vmax.f32 %v300, %v316
        %v325 = vmax.f32 %v301, %v317
        %v326 = vmax.f32 %v302, %v318
        %v327 = vmax.f32 %v303, %v319
        %v328 = vmax.f32 %v304, %v320
        %v329 = vadd.f32 %v305, %v313
        %v330 = vadd.f32 %v306, %v314
        %v331 = vadd.f32 %v307, %v315
        %v332 = vadd.f32 %v308, %v316
        %v333 = vadd.f32 %v309, %v317
        %v334 = vadd.f32 %v310, %v318
        %v335 = vadd.f32 %v311, %v319
        %v336 = vadd.f32 %v312, %v320
        %v337 = vld [vmem:[%s182 + $0x20] sm:$0xff]
        %v338 = vld [vmem:[%s182 + $0x60] sm:$0xff]
        %v339 = vld [vmem:[%s182 + $0xa0] sm:$0xff]
        %v340 = vld [vmem:[%s182 + $0xe0] sm:$0xff]
        %v341 = vld [vmem:[%s182 + $0x120] sm:$0xff]
        %v342 = vld [vmem:[%s182 + $0x160] sm:$0xff]
        %v343 = vld [vmem:[%s182 + $0x1a0] sm:$0xff]
        %v344 = vld [vmem:[%s182 + $0x1e0] sm:$0xff]
        %v345 = vmax.f32 %v321, %v337
        %v346 = vmax.f32 %v322, %v338
        %v347 = vmax.f32 %v323, %v339
        %v348 = vmax.f32 %v324, %v340
        %v349 = vmax.f32 %v325, %v341
        %v350 = vmax.f32 %v326, %v342
        %v351 = vmax.f32 %v327, %v343
        %v352 = vmax.f32 %v328, %v344
        %v353 = vadd.f32 %v329, %v337
        %v354 = vadd.f32 %v330, %v338
        %v355 = vadd.f32 %v331, %v339
        %v356 = vadd.f32 %v332, %v340
        %v357 = vadd.f32 %v333, %v341
        %v358 = vadd.f32 %v334, %v342
        %v359 = vadd.f32 %v335, %v343
        %v360 = vadd.f32 %v336, %v344
        %v361 = vld [vmem:[%s182 + $0x28] sm:$0xff]
        %v362 = vld [vmem:[%s182 + $0x68] sm:$0xff]
        %v363 = vld [vmem:[%s182 + $0xa8] sm:$0xff]
        %v364 = vld [vmem:[%s182 + $0xe8] sm:$0xff]
        %v365 = vld [vmem:[%s182 + $0x128] sm:$0xff]
        %v366 = vld [vmem:[%s182 + $0x168] sm:$0xff]
        %v367 = vld [vmem:[%s182 + $0x1a8] sm:$0xff]
        %v368 = vld [vmem:[%s182 + $0x1e8] sm:$0xff]
        %v369 = vmax.f32 %v345, %v361
        %v370 = vmax.f32 %v346, %v362
        %v371 = vmax.f32 %v347, %v363
        %v372 = vmax.f32 %v348, %v364
        %v373 = vmax.f32 %v349, %v365
        %v374 = vmax.f32 %v350, %v366
        %v375 = vmax.f32 %v351, %v367
        %v376 = vmax.f32 %v352, %v368
        %v377 = vadd.f32 %v353, %v361
        %v378 = vadd.f32 %v354, %v362
        %v379 = vadd.f32 %v355, %v363
        %v380 = vadd.f32 %v356, %v364
        %v381 = vadd.f32 %v357, %v365
        %v382 = vadd.f32 %v358, %v366
        %v383 = vadd.f32 %v359, %v367
        %v384 = vadd.f32 %v360, %v368
        %v385 = vld [vmem:[%s182 + $0x30] sm:$0xff]
        %v386 = vld [vmem:[%s182 + $0x70] sm:$0xff]
        %v387 = vld [vmem:[%s182 + $0xb0] sm:$0xff]
        %v388 = vld [vmem:[%s182 + $0xf0] sm:$0xff]
        %v389 = vld [vmem:[%s182 + $0x130] sm:$0xff]
        %v390 = vld [vmem:[%s182 + $0x170] sm:$0xff]
        %v391 = vld [vmem:[%s182 + $0x1b0] sm:$0xff]
        %v392 = vld [vmem:[%s182 + $0x1f0] sm:$0xff]
        %v393 = vmax.f32 %v369, %v385
        %v394 = vmax.f32 %v370, %v386
        %v395 = vmax.f32 %v371, %v387
        %v396 = vmax.f32 %v372, %v388
        %v397 = vmax.f32 %v373, %v389
        %v398 = vmax.f32 %v374, %v390
        %v399 = vmax.f32 %v375, %v391
        %v400 = vmax.f32 %v376, %v392
        %v401 = vadd.f32 %v377, %v385
        %v402 = vadd.f32 %v378, %v386
        %v403 = vadd.f32 %v379, %v387
        %v404 = vadd.f32 %v380, %v388
        %v405 = vadd.f32 %v381, %v389
        %v406 = vadd.f32 %v382, %v390
        %v407 = vadd.f32 %v383, %v391
        %v408 = vadd.f32 %v384, %v392
        %v409 = vld [vmem:[%s182 + $0x38] sm:$0xff]
        %v410 = vld [vmem:[%s182 + $0x78] sm:$0xff]
        %v411 = vld [vmem:[%s182 + $0xb8] sm:$0xff]
        %v412 = vld [vmem:[%s182 + $0xf8] sm:$0xff]
        %v413 = vld [vmem:[%s182 + $0x138] sm:$0xff]
        %v414 = vld [vmem:[%s182 + $0x178] sm:$0xff]
        %v415 = vld [vmem:[%s182 + $0x1b8] sm:$0xff]
        %v416 = vld [vmem:[%s182 + $0x1f8] sm:$0xff]
        %v417 = vmax.f32 %v393, %v409
        %v418 = vmax.f32 %v394, %v410
        %v419 = vmax.f32 %v395, %v411
        %v420 = vmax.f32 %v396, %v412
        %v421 = vmax.f32 %v397, %v413
        %v422 = vmax.f32 %v398, %v414
        %v423 = vmax.f32 %v399, %v415
        %v424 = vmax.f32 %v400, %v416
        %v425 = vadd.f32 %v401, %v409
        %v426 = vadd.f32 %v402, %v410
        %v427 = vadd.f32 %v403, %v411
        %v428 = vadd.f32 %v404, %v412
        %v429 = vadd.f32 %v405, %v413
        %v430 = vadd.f32 %v406, %v414
        %v431 = vadd.f32 %v407, %v415
        %v432 = vadd.f32 %v408, %v416
        %433 = vst [vmem:[#allocation2] sm:$0xff] %v417
        %434 = vst [vmem:[#allocation2 + $0x8] sm:$0xff] %v418
        %435 = vst [vmem:[#allocation2 + $0x10] sm:$0xff] %v419
        %436 = vst [vmem:[#allocation2 + $0x18] sm:$0xff] %v420
        %437 = vst [vmem:[#allocation2 + $0x20] sm:$0xff] %v421
        %438 = vst [vmem:[#allocation2 + $0x28] sm:$0xff] %v422
        %439 = vst [vmem:[#allocation2 + $0x30] sm:$0xff] %v423
        %440 = vst [vmem:[#allocation2 + $0x38] sm:$0xff] %v424
        %441 = vst [vmem:[#allocation3] sm:$0xff] %v425
        %442 = vst [vmem:[#allocation3 + $0x8] sm:$0xff] %v426
        %443 = vst [vmem:[#allocation3 + $0x10] sm:$0xff] %v427
        %444 = vst [vmem:[#allocation3 + $0x18] sm:$0xff] %v428
        %445 = vst [vmem:[#allocation3 + $0x20] sm:$0xff] %v429
        %446 = vst [vmem:[#allocation3 + $0x28] sm:$0xff] %v430
        %447 = vst [vmem:[#allocation3 + $0x30] sm:$0xff] %v431
        %448 = vst [vmem:[#allocation3 + $0x38] sm:$0xff] %v432
        // Predicated region
        $region41: #{tpu_custom_call.1} parent=31 // pred_check
          %p449 = pneg %p205
        $region42: #{tpu_custom_call.1} parent=31 // pred_check_branch
          %451 = sbr.rel (%p449) target = $region44
        $region43: #{tpu_custom_call.1} parent=31 // pred_region
          %v452 = vld [vmem:[#allocation2] sm:$0xff]
          %v453 = vld [vmem:[#allocation2 + $0x8] sm:$0xff]
          %v454 = vld [vmem:[#allocation2 + $0x10] sm:$0xff]
          %v455 = vld [vmem:[#allocation2 + $0x18] sm:$0xff]
          %v456 = vld [vmem:[#allocation2 + $0x20] sm:$0xff]
          %v457 = vld [vmem:[#allocation2 + $0x28] sm:$0xff]
          %v458 = vld [vmem:[#allocation2 + $0x30] sm:$0xff]
          %v459 = vld [vmem:[#allocation2 + $0x38] sm:$0xff]
          %460 = vmax.xlane.f32.xlu0 %v452
          %v461 = vpop.xlane.xlu0 %460
          %462 = vmax.xlane.f32.xlu0 %v453
          %v463 = vpop.xlane.xlu0 %462
          %464 = vmax.xlane.f32.xlu0 %v454
          %v465 = vpop.xlane.xlu0 %464
          %466 = vmax.xlane.f32.xlu0 %v455
          %v467 = vpop.xlane.xlu0 %466
          %468 = vmax.xlane.f32.xlu0 %v456
          %v469 = vpop.xlane.xlu0 %468
          %470 = vmax.xlane.f32.xlu0 %v457
          %v471 = vpop.xlane.xlu0 %470
          %472 = vmax.xlane.f32.xlu0 %v458
          %v473 = vpop.xlane.xlu0 %472
          %474 = vmax.xlane.f32.xlu0 %v459
          %v475 = vpop.xlane.xlu0 %474
          %v476 = vld [vmem:[#allocation3] sm:$0xff]
          %v477 = vld [vmem:[#allocation3 + $0x8] sm:$0xff]
          %v478 = vld [vmem:[#allocation3 + $0x10] sm:$0xff]
          %v479 = vld [vmem:[#allocation3 + $0x18] sm:$0xff]
          %v480 = vld [vmem:[#allocation3 + $0x20] sm:$0xff]
          %v481 = vld [vmem:[#allocation3 + $0x28] sm:$0xff]
          %v482 = vld [vmem:[#allocation3 + $0x30] sm:$0xff]
          %v483 = vld [vmem:[#allocation3 + $0x38] sm:$0xff]
          %484 = vadd.xlane.f32.xlu0 %v476
          %v485 = vpop.xlane.xlu0 %484
          %486 = vadd.xlane.f32.xlu0 %v477
          %v487 = vpop.xlane.xlu0 %486
          %488 = vadd.xlane.f32.xlu0 %v478
          %v489 = vpop.xlane.xlu0 %488
          %490 = vadd.xlane.f32.xlu0 %v479
          %v491 = vpop.xlane.xlu0 %490
          %492 = vadd.xlane.f32.xlu0 %v480
          %v493 = vpop.xlane.xlu0 %492
          %494 = vadd.xlane.f32.xlu0 %v481
          %v495 = vpop.xlane.xlu0 %494
          %496 = vadd.xlane.f32.xlu0 %v482
          %v497 = vpop.xlane.xlu0 %496
          %498 = vadd.xlane.f32.xlu0 %v483
          %v499 = vpop.xlane.xlu0 %498
          %v500 = vmul.f32 %v485, 0.0009765625
          %v501 = vmul.f32 %v487, 0.0009765625
          %v502 = vmul.f32 %v489, 0.0009765625
          %v503 = vmul.f32 %v491, 0.0009765625
          %v504 = vmul.f32 %v493, 0.0009765625
          %v505 = vmul.f32 %v495, 0.0009765625
          %v506 = vmul.f32 %v497, 0.0009765625
          %v507 = vmul.f32 %v499, 0.0009765625
          %v508 = vld [vmem:[%s1] sm:$0xff]
          %v509 = vld [vmem:[%s1 + $0x8] sm:$0xff]
          %v510 = vld [vmem:[%s1 + $0x10] sm:$0xff]
          %v511 = vld [vmem:[%s1 + $0x18] sm:$0xff]
          %v512 = vld [vmem:[%s1 + $0x20] sm:$0xff]
          %v513 = vld [vmem:[%s1 + $0x28] sm:$0xff]
          %v514 = vld [vmem:[%s1 + $0x30] sm:$0xff]
          %v515 = vld [vmem:[%s1 + $0x38] sm:$0xff]
          %v516 = vld [vmem:[%s2] sm:$0xf]
          %v525 = vlaneseq
          %v526 = vand.u32 %v525, 127
          %v527 = vlaneseq
          %v528 = vshrl.u32 %v527, 7
          %v529 = vsub.s32 %v526, %v528
          %v530 = vrot.slane %v461, %v529
          %v531 = vadd.s32 %v526, 4294967288
          %v532 = vlaneseq
          %v533 = vshrl.u32 %v532, 7
          %v534 = vsub.s32 %v531, %v533
          %v535 = vrot.slane %v463, %v534
          %vm536 = vcmask 130112
          %v537 = vsel %vm536, %v535, %v530
          %v538 = vadd.s32 %v526, 4294967280
          %v539 = vlaneseq
          %v540 = vshrl.u32 %v539, 7
          %v541 = vsub.s32 %v538, %v540
          %v542 = vrot.slane %v465, %v541
          %vm543 = vcmask 195712
          %v544 = vsel %vm543, %v542, %v537
          %v545 = vadd.s32 %v526, 4294967272
          %v546 = vlaneseq
          %v547 = vshrl.u32 %v546, 7
          %v548 = vsub.s32 %v545, %v547
          %v549 = vrot.slane %v467, %v548
          %vm550 = vcmask 261312
          %v551 = vsel %vm550, %v549, %v544
          %v552 = vadd.s32 %v526, 4294967264
          %v553 = vlaneseq
          %v554 = vshrl.u32 %v553, 7
          %v555 = vsub.s32 %v552, %v554
          %v556 = vrot.slane %v469, %v555
          %vm557 = vcmask 326912
          %v558 = vsel %vm557, %v556, %v551
          %v559 = vadd.s32 %v526, 4294967256
          %v560 = vlaneseq
          %v561 = vshrl.u32 %v560, 7
          %v562 = vsub.s32 %v559, %v561
          %v563 = vrot.slane %v471, %v562
          %vm564 = vcmask 392512
          %v565 = vsel %vm564, %v563, %v558
          %v566 = vadd.s32 %v526, 4294967248
          %v567 = vlaneseq
          %v568 = vshrl.u32 %v567, 7
          %v569 = vsub.s32 %v566, %v568
          %v570 = vrot.slane %v473, %v569
          %vm571 = vcmask 458112
          %v572 = vsel %vm571, %v570, %v565
          %v573 = vadd.s32 %v526, 4294967240
          %v574 = vlaneseq
          %v575 = vshrl.u32 %v574, 7
          %v576 = vsub.s32 %v573, %v575
          %v577 = vrot.slane %v475, %v576
          %vm578 = vcmask 523712
          %v579 = vsel %vm578, %v577, %v572
          %vm580 = vcmask 523264
          %v581 = vsel %vm580, %v579, 0
          %583 = vmatprep.subr.mxu0 0.0
          %584 = vmatpush1.msra.mxu0 %v508
          %585 = vmatprep.subr.mxu0 0.0
          %586 = vmatpush1.msra.mxu0 %v509
          %587 = vmatprep.subr.mxu0 0.0
          %588 = vmatpush1.msra.mxu0 %v510
          %589 = vmatprep.subr.mxu0 0.0
          %590 = vmatpush1.msra.mxu0 %v511
          %591 = vmatprep.subr.mxu0 0.0
          %592 = vmatpush1.msra.mxu0 %v512
          %593 = vmatprep.subr.mxu0 0.0
          %594 = vmatpush1.msra.mxu0 %v513
          %595 = vmatprep.subr.mxu0 0.0
          %596 = vmatpush1.msra.mxu0 %v514
          %597 = vmatprep.subr.mxu0 0.0
          %598 = vmatpush1.msra.mxu0 %v515
          %599 = vmatprep.subr.mxu0 0.0
          %600 = vmatpush1.msra.mxu0 0.0
          %601 = vmatprep.subr.mxu0 0.0
          %602 = vmatpush1.msra.mxu0 0.0
          %603 = vmatprep.subr.mxu0 0.0
          %604 = vmatpush1.msra.mxu0 0.0
          %605 = vmatprep.subr.mxu0 0.0
          %606 = vmatpush1.msra.mxu0 0.0
          %607 = vmatprep.subr.mxu0 0.0
          %608 = vmatpush1.msra.mxu0 0.0
          %609 = vmatprep.subr.mxu0 0.0
          %610 = vmatpush1.msra.mxu0 0.0
          %611 = vmatprep.subr.mxu0 0.0
          %612 = vmatpush1.msra.mxu0 0.0
          %613 = vmatprep.subr.mxu0 0.0
          %614 = vmatpush1.msra.mxu0 0.0
          %615 = vmatprep.subr.mxu0 0.0
          %616 = vmatpush1.msra.mxu0 0.0
          %617 = vmatprep.subr.mxu0 0.0
          %618 = vmatpush1.msra.mxu0 0.0
          %619 = vmatprep.subr.mxu0 0.0
          %620 = vmatpush1.msra.mxu0 0.0
          %621 = vmatprep.subr.mxu0 0.0
          %622 = vmatpush1.msra.mxu0 0.0
          %623 = vmatprep.subr.mxu0 0.0
          %624 = vmatpush1.msra.mxu0 0.0
          %625 = vmatprep.subr.mxu0 0.0
          %626 = vmatpush1.msra.mxu0 0.0
          %627 = vmatprep.subr.mxu0 0.0
          %628 = vmatpush1.msra.mxu0 0.0
          %629 = vmatprep.subr.mxu0 0.0
          %630 = vmatpush1.msra.mxu0 0.0
          %631 = vmatprep.subr.mxu0 0.0
          %632 = vmatpush1.msra.mxu0 0.0
          %633 = vmatprep.subr.mxu0 0.0
          %634 = vmatpush1.msra.mxu0 0.0
          %635 = vmatprep.subr.mxu0 0.0
          %636 = vmatpush1.msra.mxu0 0.0
          %637 = vmatprep.subr.mxu0 0.0
          %638 = vmatpush1.msra.mxu0 0.0
          %639 = vmatprep.subr.mxu0 0.0
          %640 = vmatpush1.msra.mxu0 0.0
          %641 = vmatprep.subr.mxu0 0.0
          %642 = vmatpush1.msra.mxu0 0.0
          %643 = vmatprep.subr.mxu0 0.0
          %644 = vmatpush1.msra.mxu0 0.0
          %645 = vmatprep.subr.mxu0 0.0
          %646 = vmatpush1.msra.mxu0 0.0
          %647 = vmatprep.mubr.f32.mxu0 0.0
          %648 = vmatmul.mubr.f32.gmra.mrb[0].mxu0 %v581
          %v649 = vpop.f32.mrb[0].mxu0
          %v650 = vadd.f32 0.0, %v649
          %v651 = vpop.f32.mrb[0].mxu0
          %652 = vdwg.mxu0
          %v653 = vmax.f32 %v650, 0.0
          %v662 = vlaneseq
          %v663 = vshrl.u32 %v662, 7
          %v664 = vsub.s32 %v526, %v663
          %v665 = vrot.slane %v500, %v664
          %v666 = vlaneseq
          %v667 = vshrl.u32 %v666, 7
          %v668 = vsub.s32 %v531, %v667
          %v669 = vrot.slane %v501, %v668
          %v670 = vsel %vm536, %v669, %v665
          %v671 = vlaneseq
          %v672 = vshrl.u32 %v671, 7
          %v673 = vsub.s32 %v538, %v672
          %v674 = vrot.slane %v502, %v673
          %v675 = vsel %vm543, %v674, %v670
          %v676 = vlaneseq
          %v677 = vshrl.u32 %v676, 7
          %v678 = vsub.s32 %v545, %v677
          %v679 = vrot.slane %v503, %v678
          %v680 = vsel %vm550, %v679, %v675
          %v681 = vlaneseq
          %v682 = vshrl.u32 %v681, 7
          %v683 = vsub.s32 %v552, %v682
          %v684 = vrot.slane %v504, %v683
          %v685 = vsel %vm557, %v684, %v680
          %v686 = vlaneseq
          %v687 = vshrl.u32 %v686, 7
          %v688 = vsub.s32 %v559, %v687
          %v689 = vrot.slane %v505, %v688
          %v690 = vsel %vm564, %v689, %v685
          %v691 = vlaneseq
          %v692 = vshrl.u32 %v691, 7
          %v693 = vsub.s32 %v566, %v692
          %v694 = vrot.slane %v506, %v693
          %v695 = vsel %vm571, %v694, %v690
          %v696 = vlaneseq
          %v697 = vshrl.u32 %v696, 7
          %v698 = vsub.s32 %v573, %v697
          %v699 = vrot.slane %v507, %v698
          %v700 = vsel %vm578, %v699, %v695
          %v701 = vsel %vm580, %v700, 0
          %703 = vmatprep.subr.mxu0 0.0
          %704 = vmatpush1.msra.mxu0 %v508
          %705 = vmatprep.subr.mxu0 0.0
          %706 = vmatpush1.msra.mxu0 %v509
          %707 = vmatprep.subr.mxu0 0.0
          %708 = vmatpush1.msra.mxu0 %v510
          %709 = vmatprep.subr.mxu0 0.0
          %710 = vmatpush1.msra.mxu0 %v511
          %711 = vmatprep.subr.mxu0 0.0
          %712 = vmatpush1.msra.mxu0 %v512
          %713 = vmatprep.subr.mxu0 0.0
          %714 = vmatpush1.msra.mxu0 %v513
          %715 = vmatprep.subr.mxu0 0.0
          %716 = vmatpush1.msra.mxu0 %v514
          %717 = vmatprep.subr.mxu0 0.0
          %718 = vmatpush1.msra.mxu0 %v515
          %719 = vmatprep.subr.mxu0 0.0
          %720 = vmatpush1.msra.mxu0 0.0
          %721 = vmatprep.subr.mxu0 0.0
          %722 = vmatpush1.msra.mxu0 0.0
          %723 = vmatprep.subr.mxu0 0.0
          %724 = vmatpush1.msra.mxu0 0.0
          %725 = vmatprep.subr.mxu0 0.0
          %726 = vmatpush1.msra.mxu0 0.0
          %727 = vmatprep.subr.mxu0 0.0
          %728 = vmatpush1.msra.mxu0 0.0
          %729 = vmatprep.subr.mxu0 0.0
          %730 = vmatpush1.msra.mxu0 0.0
          %731 = vmatprep.subr.mxu0 0.0
          %732 = vmatpush1.msra.mxu0 0.0
          %733 = vmatprep.subr.mxu0 0.0
          %734 = vmatpush1.msra.mxu0 0.0
          %735 = vmatprep.subr.mxu0 0.0
          %736 = vmatpush1.msra.mxu0 0.0
          %737 = vmatprep.subr.mxu0 0.0
          %738 = vmatpush1.msra.mxu0 0.0
          %739 = vmatprep.subr.mxu0 0.0
          %740 = vmatpush1.msra.mxu0 0.0
          %741 = vmatprep.subr.mxu0 0.0
          %742 = vmatpush1.msra.mxu0 0.0
          %743 = vmatprep.subr.mxu0 0.0
          %744 = vmatpush1.msra.mxu0 0.0
          %745 = vmatprep.subr.mxu0 0.0
          %746 = vmatpush1.msra.mxu0 0.0
          %747 = vmatprep.subr.mxu0 0.0
          %748 = vmatpush1.msra.mxu0 0.0
          %749 = vmatprep.subr.mxu0 0.0
          %750 = vmatpush1.msra.mxu0 0.0
          %751 = vmatprep.subr.mxu0 0.0
          %752 = vmatpush1.msra.mxu0 0.0
          %753 = vmatprep.subr.mxu0 0.0
          %754 = vmatpush1.msra.mxu0 0.0
          %755 = vmatprep.subr.mxu0 0.0
          %756 = vmatpush1.msra.mxu0 0.0
          %757 = vmatprep.subr.mxu0 0.0
          %758 = vmatpush1.msra.mxu0 0.0
          %759 = vmatprep.subr.mxu0 0.0
          %760 = vmatpush1.msra.mxu0 0.0
          %761 = vmatprep.subr.mxu0 0.0
          %762 = vmatpush1.msra.mxu0 0.0
          %763 = vmatprep.subr.mxu0 0.0
          %764 = vmatpush1.msra.mxu0 0.0
          %765 = vmatprep.subr.mxu0 0.0
          %766 = vmatpush1.msra.mxu0 0.0
          %767 = vmatprep.mubr.f32.mxu0 0.0
          %768 = vmatmul.mubr.f32.gmra.mrb[0].mxu0 %v701
          %v769 = vpop.f32.mrb[0].mxu0
          %v770 = vadd.f32 0.0, %v769
          %v771 = vpop.f32.mrb[0].mxu0
          %772 = vdwg.mxu0
          %v773 = vmax.f32 %v770, 0.0
          %v774 = vadd.f32 %v653, %v773
          %vm775 = vcmask 31744
          %v777 = vsel %vm775, %v774, 0
          %vm779 = vcmask 1043456
          %v781 = vsel %vm779, %v516, 0
          %783 = vmatprep.subr.mxu0 0.0
          %784 = vmatpush1.msra.mxu0 %v781
          %785 = vmatprep.subr.mxu0 0.0
          %786 = vmatpush1.msra.mxu0 0.0
          %787 = vmatprep.subr.mxu0 0.0
          %788 = vmatpush1.msra.mxu0 0.0
          %789 = vmatprep.subr.mxu0 0.0
          %790 = vmatpush1.msra.mxu0 0.0
          %791 = vmatprep.subr.mxu0 0.0
          %792 = vmatpush1.msra.mxu0 0.0
          %793 = vmatprep.subr.mxu0 0.0
          %794 = vmatpush1.msra.mxu0 0.0
          %795 = vmatprep.subr.mxu0 0.0
          %796 = vmatpush1.msra.mxu0 0.0
          %797 = vmatprep.subr.mxu0 0.0
          %798 = vmatpush1.msra.mxu0 0.0
          %799 = vmatprep.subr.mxu0 0.0
          %800 = vmatpush1.msra.mxu0 0.0
          %801 = vmatprep.subr.mxu0 0.0
          %802 = vmatpush1.msra.mxu0 0.0
          %803 = vmatprep.subr.mxu0 0.0
          %804 = vmatpush1.msra.mxu0 0.0
          %805 = vmatprep.subr.mxu0 0.0
          %806 = vmatpush1.msra.mxu0 0.0
          %807 = vmatprep.subr.mxu0 0.0
          %808 = vmatpush1.msra.mxu0 0.0
          %809 = vmatprep.subr.mxu0 0.0
          %810 = vmatpush1.msra.mxu0 0.0
          %811 = vmatprep.subr.mxu0 0.0
          %812 = vmatpush1.msra.mxu0 0.0
          %813 = vmatprep.subr.mxu0 0.0
          %814 = vmatpush1.msra.mxu0 0.0
          %815 = vmatprep.subr.mxu0 0.0
          %816 = vmatpush1.msra.mxu0 0.0
          %817 = vmatprep.subr.mxu0 0.0
          %818 = vmatpush1.msra.mxu0 0.0
          %819 = vmatprep.subr.mxu0 0.0
          %820 = vmatpush1.msra.mxu0 0.0
          %821 = vmatprep.subr.mxu0 0.0
          %822 = vmatpush1.msra.mxu0 0.0
          %823 = vmatprep.subr.mxu0 0.0
          %824 = vmatpush1.msra.mxu0 0.0
          %825 = vmatprep.subr.mxu0 0.0
          %826 = vmatpush1.msra.mxu0 0.0
          %827 = vmatprep.subr.mxu0 0.0
          %828 = vmatpush1.msra.mxu0 0.0
          %829 = vmatprep.subr.mxu0 0.0
          %830 = vmatpush1.msra.mxu0 0.0
          %831 = vmatprep.subr.mxu0 0.0
          %832 = vmatpush1.msra.mxu0 0.0
          %833 = vmatprep.subr.mxu0 0.0
          %834 = vmatpush1.msra.mxu0 0.0
          %835 = vmatprep.subr.mxu0 0.0
          %836 = vmatpush1.msra.mxu0 0.0
          %837 = vmatprep.subr.mxu0 0.0
          %838 = vmatpush1.msra.mxu0 0.0
          %839 = vmatprep.subr.mxu0 0.0
          %840 = vmatpush1.msra.mxu0 0.0
          %841 = vmatprep.subr.mxu0 0.0
          %842 = vmatpush1.msra.mxu0 0.0
          %843 = vmatprep.subr.mxu0 0.0
          %844 = vmatpush1.msra.mxu0 0.0
          %845 = vmatprep.subr.mxu0 0.0
          %846 = vmatpush1.msra.mxu0 0.0
          %847 = vmatprep.mubr.f32.mxu0 0.0
          %848 = vmatmul.mubr.f32.gmra.mrb[0].mxu0 %v777
          %v849 = vpop.f32.mrb[0].mxu0
          %v850 = vadd.f32 0.0, %v849
          %v851 = vpop.f32.mrb[0].mxu0
          %852 = vdwg.mxu0
          %v853 = vxor.u32 %v850, 2147483648
          %v854 = vmul.f32 %v853, 1.442695
          %v855 = vpow.pop %v854
          %v856 = vadd.f32 %v855, 1.0
          %v857 = vrcp.pop %v856
          %v858 = vmul.f32 1.0, %v857
          %vm859 = vcmask 516096
          %860 = vst.msk [vmem:[%s203] sm:$0x1] %vm859, %v858
        $region44: #{tpu_custom_call.1} parent=31 // pred_fallthru
          _
        %s861 = sand.u32 %s110, 1
        %s862 = scalar_lea.sflag [#allocation6], %s861
        %s863 = sand.u32 %s110, 1
        %s864 = scalar_lea.vmem [#allocation7], %s863
        // Predicated region
        $region45: #{tpu_custom_call.1} parent=31 // pred_check
          %p865 = pneg %p120
        $region46: #{tpu_custom_call.1} parent=31 // pred_check_branch
          %867 = sbr.rel (%p865) target = $region48
        $region47: #{tpu_custom_call.1} parent=31 // pred_region
          %s869 = ssub.s32 16, 16
          %870 = vsyncadd %s862, %s869
          %s871 = smul.addr %s24, 16
          %s872 = scalar_lea.hbm %s3, %s871
          %s874 = sshll.u32 %s864, 4
          %s875 = int_to_ptr.vmem [resolvable:$true] %s874
          %877 = dma.vmem_to_hbm [thread:$0]  %s875, 16, %s872, %s862
        $region48: #{tpu_custom_call.1} parent=31 // pred_fallthru
          _
      $region32: #{tpu_custom_call.1} parent=5 // pred_fallthru
        _
      %p878 = scmp.le.s32.totalorder 2, %s15
      // Predicated region
      $region49: #{tpu_custom_call.1} parent=5 // pred_check
        %p879 = pneg %p878
      $region50: #{tpu_custom_call.1} parent=5 // pred_check_branch
        %881 = sbr.rel (%p879) target = $region52
      $region51: #{tpu_custom_call.1} parent=5 // pred_region
        %s882 = ssub.s32 %s15, 2
        // Predicated region
        $region53: #{tpu_custom_call.1} parent=51 // pred_check
          %p883 = pneg %p126
        $region54: #{tpu_custom_call.1} parent=51 // pred_check_branch
          %885 = sbr.rel (%p883) target = $region56
        $region55: #{tpu_custom_call.1} parent=51 // pred_region
          %s886 = sand.u32 %s111, 1
          %s887 = scalar_lea.sflag [#allocation6], %s886
          %s888 = sand.u32 %s111, 1
          %s889 = scalar_lea.vmem [#allocation7], %s888
          %890 = dma.done %s887, 16
        $region56: #{tpu_custom_call.1} parent=51 // pred_fallthru
          _
      $region52: #{tpu_custom_call.1} parent=5 // pred_fallthru
        _
    $region6: #{tpu_custom_call.1} parent=1 // loop_footer
      %s19 = sadd.s32 1, %s15
    $region7: #{tpu_custom_call.1} parent=1 // loop_footer_branch
      %14 = sbr.rel target = $region3
    $region8: #{tpu_custom_call.1} parent=1 // loop_exit
      _
    %891 = vsyncpa [#allocation5], 1
    %s892 = scalar_lea.sflag [#allocation5], 1
    %893 = vsyncpa %s892, 1
    %894 = vsyncpa [#allocation6], 1
    %s895 = scalar_lea.sflag [#allocation6], 1
    %896 = vsyncpa %s895, 1

</llo_original>
